<compile_context>
chip_gen: v7x
topology: tpu7x:2x2x1
jax: 0.10.0
libtpu: 0.0.40
codegen_flags: <defaults>
</compile_context>

<pallas_src>
import functools

import jax
import jax.numpy as jnp
from jax.experimental import pallas as pl
from jax.experimental.pallas import tpu as pltpu

LAMADA = 0.001


def _round_up(x, m):
    return ((x + m - 1) // m) * m


def _has_bf16_valu():
    """bf16 element-wise ops are only a win on v6e/v7x (v5e has no bf16 VALU)."""
    try:
        kind = jax.devices()[0].device_kind.lower()
    except Exception:
        return False
    return any(tag in kind for tag in ("v6", "v7", "7x"))


def _auto_tile_rows(F, H, budget_bytes=36 * 1024 * 1024):
    """Largest batch tile whose double-buffered inputs + f32 temps fit the budget."""
    Fp = _round_up(F, 128)   # lane padding of the feature dim
    Hp = _round_up(H, 128)
    per_row = (2 * 2 * Fp * 2        # user + item bf16 tiles, double-buffered
               + 2 * 128 * 4         # (TB,1) f32 offset column, lane-padded, dbl-buffered
               + 4 * (Hp + 3 * Fp))  # f32 temporaries: h, uf, uf*item, item_f32
    resident = 2 * 2 * (Fp * Hp * 2) + 4 * (Hp + Fp) * 8   # weights + biases (generous)
    tb = max(budget_bytes - resident, 1 << 20) // per_row
    tb = min(int(tb) // 16 * 16, 8192)                     # multiple of 16, cap 8192
    return max(256, tb)


def _filter_tail(h_pre_f32, w2_bf, b2_f32, bf16_act):
    """LeakyReLU(0.1) -> Linear(2F->F) -> LeakyReLU(0.1), given h_pre = x@W1+b1 (f32).

    Shared by the kernel and the wrapper's zero-row (padding) correction so the
    arithmetic matches exactly.
    """
    if bf16_act:
        h = h_pre_f32.astype(jnp.bfloat16)
        h = jnp.where(h >= 0, h, h * 0.1)           # bf16 VALU (v6e/v7x)
    else:
        h = jnp.where(h_pre_f32 >= 0, h_pre_f32, h_pre_f32 * 0.1)
        h = h.astype(jnp.bfloat16)                  # f32 VALU path (v5e)
    uf = jnp.dot(h, w2_bf, preferred_element_type=jnp.float32) + b2_f32
    return jnp.where(uf >= 0, uf, uf * 0.1)         # (.., F) f32


def _bpr_partial_kernel(user_ref, item_ref, off_ref, w1_ref, b1_ref, w2_ref, b2_ref,
                        out_ref, *, bf16_act):
    # user_filter: Linear(F->2F) + LeakyReLU(0.1) + Linear(2F->F) + LeakyReLU(0.1)
    h_pre = jnp.dot(user_ref[...], w1_ref[...],
                    preferred_element_type=jnp.float32) + b1_ref[...]   # (TB, H) f32
    uf = _filter_tail(h_pre, w2_ref[...], b2_ref[...], bf16_act)        # (TB, F) f32

    it = item_ref[...].astype(jnp.float32)                              # (TB, F)
    off = off_ref[...]                                                  # (TB, 1) f32: ub+ib+avg-rating

    # diff = prediction - rating = rowsum(uf * item) + offset
    # (padded rows: item=0, offset=0 -> diff=0, itsq contribution=0; uf of
    #  padded rows is a constant row, corrected exactly in the wrapper)
    diff = jnp.sum(uf * it, axis=-1, keepdims=True) + off               # (TB, 1)

    sse = jnp.sum(diff * diff, keepdims=True)                           # (1, 1) f32
    ufsq = jnp.sum(uf * uf, keepdims=True)                              # (1, 1)
    itsq = jnp.sum(it * it, keepdims=True)                              # (1, 1)

    # One lane-dense (8,128) store per tile: lanes 0/1/2 carry the partials.
    lane = jax.lax.broadcasted_iota(jnp.int32, (8, 128), 1)
    out_ref[0] = jnp.where(lane == 0, sse,
                 jnp.where(lane == 1, ufsq,
                 jnp.where(lane == 2, itsq, 0.0)))


def bpr_icml_com_forward(params, user_idx, item_idx, ratings, *, tile_b=None):
    """Returns (loss, loss2, l_penalty_1, l_penalty_2) matching the PyTorch forward
    with GenDisc=None, AgeDisc=None, return_batch_embedding=False."""
    # --- glue: embedding gathers (index lookups) in plain JAX ---
    # TODO(synk): an in-kernel gather is only worthwhile when the tables are
    # VMEM-resident; the gathered (B,F) arrays make one HBM round trip here.
    user_emb = params["embed_user"][user_idx]             # (B, F)
    item_emb = params["embed_item"][item_idx]             # (B, F)
    ubias = params["user_bias"][user_idx]                 # (B, 1)
    ibias = params["item_bias"][item_idx]                 # (B, 1)
    ratings = ratings.astype(jnp.float32).reshape(-1, 1)  # (B, 1)
    avg = jnp.asarray(params["avg_rating"], jnp.float32)

    B, F = user_emb.shape
    H = params["w1"].shape[1]                              # 2 * F

    # Single skinny side column: offset = ub + ib + avg - rating.
    offset = (ubias + ibias + avg - ratings).astype(jnp.float32)   # (B, 1)

    # Batch tiling: VMEM-budgeted tile, forced to a multiple of 16.
    cap = _auto_tile_rows(F, H)
    tile_b = cap if tile_b is None else min(int(tile_b), cap)
    TB = _round_up(max(16, min(tile_b, B)), 16)
    B_pad = _round_up(B, TB)
    n_pad = B_pad - B
    if n_pad:
        user_emb = jnp.pad(user_emb, ((0, n_pad), (0, 0)))   # zero rows
        item_emb = jnp.pad(item_emb, ((0, n_pad), (0, 0)))
        offset = jnp.pad(offset, ((0, n_pad), (0, 0)))

    # bf16 for the dominant HBM streams and MXU weights; biases stay f32.
    user_bf = user_emb.astype(jnp.bfloat16)
    item_bf = item_emb.astype(jnp.bfloat16)
    w1 = params["w1"].astype(jnp.bfloat16)
    w2 = params["w2"].astype(jnp.bfloat16)
    b1 = params["b1"].astype(jnp.float32)
    b2 = params["b2"].astype(jnp.float32)

    bf16_act = _has_bf16_valu()
    num_tiles = B_pad // TB
    kernel = functools.partial(_bpr_partial_kernel, bf16_act=bf16_act)

    parts = pl.pallas_call(
        kernel,
        out_shape=jax.ShapeDtypeStruct((num_tiles, 8, 128), jnp.float32),
        grid=(num_tiles,),
        in_specs=[
            pl.BlockSpec((TB, F), lambda i: (i, 0)),      # user embedding (bf16)
            pl.BlockSpec((TB, F), lambda i: (i, 0)),      # item embedding (bf16)
            pl.BlockSpec((TB, 1), lambda i: (i, 0)),      # offset column  (f32)
            pl.BlockSpec((F, H), lambda i: (0, 0)),       # W1 (VMEM-resident)
            pl.BlockSpec((1, H), lambda i: (0, 0)),       # b1
            pl.BlockSpec((H, F), lambda i: (0, 0)),       # W2
            pl.BlockSpec((1, F), lambda i: (0, 0)),       # b2
        ],
        out_specs=pl.BlockSpec((1, 8, 128), lambda i: (i, 0, 0)),   # per-tile partials
        compiler_params=pltpu.CompilerParams(
            dimension_semantics=("parallel",),            # megacore-friendly (v7x)
            vmem_limit_bytes=48 * 1024 * 1024),           # > v5e's 16 MiB scoped default
    )(user_bf, item_bf, offset, w1, b1, w2, b2)

    # Tiny final reduce + loss math in plain JAX.
    sse = jnp.sum(parts[:, 0, 0])
    ufsq = jnp.sum(parts[:, 0, 1])
    itsq = jnp.sum(parts[:, 0, 2])

    if n_pad:
        # Padded rows (user=0) produce a constant uf row = filter_tail(b1);
        # remove their contribution to sum(uf^2) exactly (same arithmetic path).
        uf0 = _filter_tail(b1, w2, b2, bf16_act)          # (1, F)
        ufsq = ufsq - n_pad * jnp.sum(uf0 * uf0)

    loss2 = sse / B
    l2 = LAMADA * (ufsq + itsq) / (B * F)
    loss = loss2 + l2
    return loss, loss2, 0.0, 0.0


def _reference_forward(params, user_idx, item_idx, ratings):
    """Pure-JAX f32 reference mirroring the PyTorch forward."""
    user = params["embed_user"][user_idx]
    item = params["embed_item"][item_idx]
    ub = params["user_bias"][user_idx][:, 0]
    ib = params["item_bias"][item_idx][:, 0]
    ratings = ratings.astype(jnp.float32)

    h = user @ params["w1"] + params["b1"][0]
    h = jnp.where(h >= 0, h, 0.1 * h)
    uf = h @ params["w2"] + params["b2"][0]
    uf = jnp.where(uf >= 0, uf, 0.1 * uf)

    pred = (uf * item).sum(-1) + ub + ib + params["avg_rating"]
    loss2 = jnp.mean((pred - ratings) ** 2)
    l2 = LAMADA * jnp.mean(uf ** 2) + LAMADA * jnp.mean(item ** 2)
    return loss2 + l2, loss2


def init_params(key, user_num, item_num, factor_num, avg_rating):
    ks = jax.random.split(key, 8)
    F = factor_num
    H = 2 * F
    # Embeddings: normal(std=0.01), same as the PyTorch module.
    embed_user = 0.01 * jax.random.normal(ks[0], (user_num, F), jnp.float32)
    embed_item = 0.01 * jax.random.normal(ks[1], (item_num, F), jnp.float32)
    user_bias = 0.01 * jax.random.normal(ks[2], (user_num, 1), jnp.float32)
    item_bias = 0.01 * jax.random.normal(ks[3], (item_num, 1), jnp.float32)
    # Linear layers: uniform init with PyTorch-style fan-in bound.
    bound1 = 1.0 / jnp.sqrt(F)
    bound2 = 1.0 / jnp.sqrt(H)
    w1 = jax.random.uniform(ks[4], (F, H), jnp.float32, -bound1, bound1)
    b1 = jax.random.uniform(ks[5], (1, H), jnp.float32, -bound1, bound1)
    w2 = jax.random.uniform(ks[6], (H, F), jnp.float32, -bound2, bound2)
    b2 = jax.random.uniform(ks[7], (1, F), jnp.float32, -bound2, bound2)
    return {
        "embed_user": embed_user, "embed_item": embed_item,
        "user_bias": user_bias, "item_bias": item_bias,
        "w1": w1, "b1": b1, "w2": w2, "b2": b2,
        "avg_rating": jnp.float32(avg_rating),
    }


if __name__ == "__main__":
    key = jax.random.PRNGKey(0)
    user_num, item_num, factor_num = 64, 128, 32
    avg_rating = 3.5

    kp, kidx = jax.random.split(key, 2)
    params = init_params(kp, user_num, item_num, factor_num, avg_rating)

    # (8, None)  -> auto tile, single padded tile (exercises pad correction)
    # (40, 16)   -> 3-tile parallel grid with a partially padded last tile
    # (64, 16)   -> 4-tile parallel grid, no padding
    for batch, tile_b in ((8, None), (40, 16), (64, 16)):
        ku, ki, kr = jax.random.split(jax.random.fold_in(kidx, batch), 3)
        user_idx = jax.random.randint(ku, (batch,), 0, user_num)
        item_idx = jax.random.randint(ki, (batch,), 0, item_num)
        ratings = jax.random.randint(kr, (batch,), 1, 6).astype(jnp.float32)

        loss, loss2, p1, p2 = bpr_icml_com_forward(
            params, user_idx, item_idx, ratings, tile_b=tile_b)
        jax.block_until_ready((loss, loss2))

        ref_loss, ref_loss2 = _reference_forward(params, user_idx, item_idx, ratings)
        # bf16 input streams (f32 accumulation) -> slightly loosened tolerance.
        assert jnp.allclose(loss, ref_loss, rtol=5e-3, atol=2e-5), (batch, loss, ref_loss)
        assert jnp.allclose(loss2, ref_loss2, rtol=5e-3, atol=2e-5), (batch, loss2, ref_loss2)

    print("KERNEL_OK")
</pallas_src>

<mosaic_0001>
module attributes {stable_mosaic.version = 11 : i64} {
  func.func @_bpr_partial_kernel(%arg0: i32, %arg1: memref<16x32xbf16, #tpu.memory_space<vmem>>, %arg2: memref<16x32xbf16, #tpu.memory_space<vmem>>, %arg3: memref<16x1xf32, #tpu.memory_space<vmem>>, %arg4: memref<32x64xbf16, #tpu.memory_space<vmem>>, %arg5: memref<1x64xf32, #tpu.memory_space<vmem>>, %arg6: memref<64x32xbf16, #tpu.memory_space<vmem>>, %arg7: memref<1x32xf32, #tpu.memory_space<vmem>>, %arg8: memref<1x8x128xf32, #tpu.memory_space<vmem>>) attributes {dimension_semantics = [#tpu.dimension_semantics<parallel>], iteration_bounds = array<i64: 1>, scalar_prefetch = 0 : i64, scratch_operands = 0 : i64, tpu.core_type = #tpu.core_type<tc>, window_params = [{transform_indices = @transform_0, window_bounds = array<i64: 16, 32>}, {transform_indices = @transform_1, window_bounds = array<i64: 16, 32>}, {transform_indices = @transform_2, window_bounds = array<i64: 16, 1>}, {pipeline_mode = #tpu.pipeline_mode<synchronous>, transform_indices = @transform_3, window_bounds = array<i64: 32, 64>}, {pipeline_mode = #tpu.pipeline_mode<synchronous>, transform_indices = @transform_4, window_bounds = array<i64: 1, 64>}, {pipeline_mode = #tpu.pipeline_mode<synchronous>, transform_indices = @transform_5, window_bounds = array<i64: 64, 32>}, {pipeline_mode = #tpu.pipeline_mode<synchronous>, transform_indices = @transform_6, window_bounds = array<i64: 1, 32>}, {transform_indices = @transform_7, window_bounds = array<i64: 1, 8, 128>}]} {
    %c0 = arith.constant 0 : index
    %c0_0 = arith.constant 0 : index
    %0 = vector.load %arg1[%c0, %c0_0] : memref<16x32xbf16, #tpu.memory_space<vmem>>, vector<16x32xbf16>
    %c0_1 = arith.constant 0 : index
    %c0_2 = arith.constant 0 : index
    %1 = vector.load %arg4[%c0_1, %c0_2] : memref<32x64xbf16, #tpu.memory_space<vmem>>, vector<32x64xbf16>
    %cst = arith.constant dense<0.000000e+00> : vector<16x64xf32>
    %2 = tpu.matmul %0, %1, %cst {dimension_numbers = #tpu.dot_dimension_numbers<[1], [0], [0], [1], [0, 0, 1, 1], [], []>} : vector<16x32xbf16>, vector<32x64xbf16>, vector<16x64xf32> -> vector<16x64xf32>
    %c0_3 = arith.constant 0 : index
    %c0_4 = arith.constant 0 : index
    %3 = vector.load %arg5[%c0_3, %c0_4] : memref<1x64xf32, #tpu.memory_space<vmem>>, vector<1x64xf32>
    %4 = vector.broadcast %3 : vector<1x64xf32> to vector<16x64xf32>
    %5 = arith.addf %2, %4 : vector<16x64xf32>
    %c0_5 = arith.constant 0 : index
    %c0_6 = arith.constant 0 : index
    %6 = vector.load %arg6[%c0_5, %c0_6] : memref<64x32xbf16, #tpu.memory_space<vmem>>, vector<64x32xbf16>
    %c0_7 = arith.constant 0 : index
    %c0_8 = arith.constant 0 : index
    %7 = vector.load %arg7[%c0_7, %c0_8] : memref<1x32xf32, #tpu.memory_space<vmem>>, vector<1x32xf32>
    %cst_9 = arith.constant 0.000000e+00 : f32
    %8 = vector.broadcast %cst_9 : f32 to vector<16x64xf32>
    %9 = arith.cmpf oge, %5, %8 : vector<16x64xf32>
    %cst_10 = arith.constant 1.000000e-01 : f32
    %10 = vector.broadcast %cst_10 : f32 to vector<16x64xf32>
    %11 = arith.mulf %5, %10 : vector<16x64xf32>
    %12 = arith.select %9, %5, %11 : vector<16x64xi1>, vector<16x64xf32>
    %13 = arith.truncf %12 : vector<16x64xf32> to vector<16x64xbf16>
    %cst_11 = arith.constant dense<0.000000e+00> : vector<16x32xf32>
    %14 = tpu.matmul %13, %6, %cst_11 {dimension_numbers = #tpu.dot_dimension_numbers<[1], [0], [0], [1], [0, 0, 1, 1], [], []>} : vector<16x64xbf16>, vector<64x32xbf16>, vector<16x32xf32> -> vector<16x32xf32>
    %15 = vector.broadcast %7 : vector<1x32xf32> to vector<16x32xf32>
    %16 = arith.addf %14, %15 : vector<16x32xf32>
    %cst_12 = arith.constant 0.000000e+00 : f32
    %17 = vector.broadcast %cst_12 : f32 to vector<16x32xf32>
    %18 = arith.cmpf oge, %16, %17 : vector<16x32xf32>
    %cst_13 = arith.constant 1.000000e-01 : f32
    %19 = vector.broadcast %cst_13 : f32 to vector<16x32xf32>
    %20 = arith.mulf %16, %19 : vector<16x32xf32>
    %21 = arith.select %18, %16, %20 : vector<16x32xi1>, vector<16x32xf32>
    %c0_14 = arith.constant 0 : index
    %c0_15 = arith.constant 0 : index
    %22 = vector.load %arg2[%c0_14, %c0_15] : memref<16x32xbf16, #tpu.memory_space<vmem>>, vector<16x32xbf16>
    %23 = arith.extf %22 : vector<16x32xbf16> to vector<16x32xf32>
    %c0_16 = arith.constant 0 : index
    %c0_17 = arith.constant 0 : index
    %24 = vector.load %arg3[%c0_16, %c0_17] : memref<16x1xf32, #tpu.memory_space<vmem>>, vector<16x1xf32>
    %25 = arith.mulf %21, %23 : vector<16x32xf32>
    %cst_18 = arith.constant dense<0.000000e+00> : vector<16xf32>
    %26 = vector.multi_reduction <add>, %25, %cst_18 [1] : vector<16x32xf32> to vector<16xf32>
    %27 = vector.shape_cast %26 : vector<16xf32> to vector<16x1xf32>
    %28 = arith.addf %27, %24 : vector<16x1xf32>
    %29 = arith.mulf %28, %28 : vector<16x1xf32>
    %30 = vector.shape_cast %29 : vector<16x1xf32> to vector<1x16x1xf32>
    %cst_19 = arith.constant dense<0.000000e+00> : vector<1xf32>
    %31 = vector.multi_reduction <add>, %30, %cst_19 [1, 2] : vector<1x16x1xf32> to vector<1xf32>
    %32 = vector.shape_cast %31 : vector<1xf32> to vector<1x1x1xf32>
    %33 = vector.extract %32[0, 0, 0] : f32 from vector<1x1x1xf32>
    %34 = vector.broadcast %33 : f32 to vector<1x1xf32>
    %35 = arith.mulf %21, %21 : vector<16x32xf32>
    %36 = vector.shape_cast %35 : vector<16x32xf32> to vector<1x16x32xf32>
    %cst_20 = arith.constant dense<0.000000e+00> : vector<1xf32>
    %37 = vector.multi_reduction <add>, %36, %cst_20 [1, 2] : vector<1x16x32xf32> to vector<1xf32>
    %38 = vector.shape_cast %37 : vector<1xf32> to vector<1x1x1xf32>
    %39 = vector.extract %38[0, 0, 0] : f32 from vector<1x1x1xf32>
    %40 = vector.broadcast %39 : f32 to vector<1x1xf32>
    %41 = arith.mulf %23, %23 : vector<16x32xf32>
    %42 = vector.shape_cast %41 : vector<16x32xf32> to vector<1x16x32xf32>
    %cst_21 = arith.constant dense<0.000000e+00> : vector<1xf32>
    %43 = vector.multi_reduction <add>, %42, %cst_21 [1, 2] : vector<1x16x32xf32> to vector<1xf32>
    %44 = vector.shape_cast %43 : vector<1xf32> to vector<1x1x1xf32>
    %45 = vector.extract %44[0, 0, 0] : f32 from vector<1x1x1xf32>
    %46 = vector.broadcast %45 : f32 to vector<1x1xf32>
    %47 = tpu.iota {dimensions = array<i32: 1>} : vector<8x128xi32>
    %c0_i32 = arith.constant 0 : i32
    %48 = vector.broadcast %c0_i32 : i32 to vector<8x128xi32>
    %49 = arith.cmpi eq, %47, %48 : vector<8x128xi32>
    %c1_i32 = arith.constant 1 : i32
    %50 = vector.broadcast %c1_i32 : i32 to vector<8x128xi32>
    %51 = arith.cmpi eq, %47, %50 : vector<8x128xi32>
    %c2_i32 = arith.constant 2 : i32
    %52 = vector.broadcast %c2_i32 : i32 to vector<8x128xi32>
    %53 = arith.cmpi eq, %47, %52 : vector<8x128xi32>
    %cst_22 = arith.constant 0.000000e+00 : f32
    %54 = vector.shape_cast %46 : vector<1x1xf32> to vector<1x1xf32>
    %55 = vector.broadcast %54 : vector<1x1xf32> to vector<8x128xf32>
    %56 = vector.broadcast %cst_22 : f32 to vector<8x128xf32>
    %57 = arith.select %53, %55, %56 : vector<8x128xi1>, vector<8x128xf32>
    %58 = vector.shape_cast %40 : vector<1x1xf32> to vector<1x1xf32>
    %59 = vector.broadcast %58 : vector<1x1xf32> to vector<8x128xf32>
    %60 = arith.select %51, %59, %57 : vector<8x128xi1>, vector<8x128xf32>
    %61 = vector.shape_cast %34 : vector<1x1xf32> to vector<1x1xf32>
    %62 = vector.broadcast %61 : vector<1x1xf32> to vector<8x128xf32>
    %63 = arith.select %49, %62, %60 : vector<8x128xi1>, vector<8x128xf32>
    %c0_23 = arith.constant 0 : index
    %c0_24 = arith.constant 0 : index
    %c0_25 = arith.constant 0 : index
    %64 = vector.load %arg8[%c0_23, %c0_24, %c0_25] : memref<1x8x128xf32, #tpu.memory_space<vmem>>, vector<1x8x128xf32>
    %65 = vector.shape_cast %64 : vector<1x8x128xf32> to vector<8x128xf32>
    %66 = vector.shape_cast %63 : vector<8x128xf32> to vector<1x8x128xf32>
    tpu.vector_store %arg8[%c0_23, %c0_24, %c0_25], %66 {strides = array<i32>} : memref<1x8x128xf32, #tpu.memory_space<vmem>>, vector<1x8x128xf32>,
    return
  }
  func.func @transform_0(%arg0: i32) -> (i32, i32) {
    %c0_i32 = arith.constant 0 : i32
    %c0_i32_0 = arith.constant 0 : i32
    return %arg0, %c0_i32 : i32, i32
  }
  func.func @transform_1(%arg0: i32) -> (i32, i32) {
    %c0_i32 = arith.constant 0 : i32
    %c0_i32_0 = arith.constant 0 : i32
    return %arg0, %c0_i32 : i32, i32
  }
  func.func @transform_2(%arg0: i32) -> (i32, i32) {
    %c0_i32 = arith.constant 0 : i32
    %c0_i32_0 = arith.constant 0 : i32
    return %arg0, %c0_i32 : i32, i32
  }
  func.func @transform_3(%arg0: i32) -> (i32, i32) {
    %c0_i32 = arith.constant 0 : i32
    %c0_i32_0 = arith.constant 0 : i32
    %c0_i32_1 = arith.constant 0 : i32
    return %c0_i32, %c0_i32_0 : i32, i32
  }
  func.func @transform_4(%arg0: i32) -> (i32, i32) {
    %c0_i32 = arith.constant 0 : i32
    %c0_i32_0 = arith.constant 0 : i32
    %c0_i32_1 = arith.constant 0 : i32
    return %c0_i32, %c0_i32_0 : i32, i32
  }
  func.func @transform_5(%arg0: i32) -> (i32, i32) {
    %c0_i32 = arith.constant 0 : i32
    %c0_i32_0 = arith.constant 0 : i32
    %c0_i32_1 = arith.constant 0 : i32
    return %c0_i32, %c0_i32_0 : i32, i32
  }
  func.func @transform_6(%arg0: i32) -> (i32, i32) {
    %c0_i32 = arith.constant 0 : i32
    %c0_i32_0 = arith.constant 0 : i32
    %c0_i32_1 = arith.constant 0 : i32
    return %c0_i32, %c0_i32_0 : i32, i32
  }
  func.func @transform_7(%arg0: i32) -> (i32, i32, i32) {
    %c0_i32 = arith.constant 0 : i32
    %c0_i32_0 = arith.constant 0 : i32
    %c0_i32_1 = arith.constant 0 : i32
    return %arg0, %c0_i32, %c0_i32_0 : i32, i32, i32
  }
}

</mosaic_0001>

<llo_original>
// kernel: tpu_custom_call.1
$region0: #{tpu_custom_call.1}
  #allocation0 [shape = 'u32[]', space=smem, size = 0x4, offset = 0x4, fixed_abs, tag = 'smem constant byte address 0x4 - core index']
  #allocation1 [shape = 'u32[144,128]{1,0:T(1,128)}', space=vmem, size = 0x12000, scoped, tag = 'internal scratch']
  %s0 = inlined_call_operand.vmem [shape: bf16[16,32], index: 0, kind: input, shape index: {}]
  %s1 = inlined_call_operand.vmem [shape: bf16[16,32], index: 1, kind: input, shape index: {}]
  %s2 = inlined_call_operand.vmem [shape: f32[16,1], index: 2, kind: input, shape index: {}]
  %s3 = inlined_call_operand.vmem [shape: bf16[32,64], index: 3, kind: input, shape index: {}]
  %s4 = inlined_call_operand.vmem [shape: f32[1,64], index: 4, kind: input, shape index: {}]
  %s5 = inlined_call_operand.vmem [shape: bf16[64,32], index: 5, kind: input, shape index: {}]
  %s6 = inlined_call_operand.vmem [shape: f32[1,32], index: 6, kind: input, shape index: {}]
  %s7 = inlined_call_operand.hbm [shape: f32[1,8,128], index: 7, kind: output, shape index: {}]
  %s8 = sld [smem:[#allocation0]]
  $region38: #{tpu_custom_call.1} parent=0
    _
  %s10 = ssub.s32 1, %s8
  %s11 = scalar_select 0, %s10, %s8
  $region1: #{tpu_custom_call.1} parent=0
    #allocation2 [shape = 'u8[4096]{0}', space=vmem, size = 0x1000, scoped, tag = 'output window, operand 0, single buffered']
    #allocation3 [shape = 's32[1]{0}', space=sflag, size = 0x4, scoped, tag = 'scoped memory for tpu_custom_call.1']
    %12 = vsyncpa [#allocation3], 0
    // Predicated region
    $region2: #{tpu_custom_call.1} parent=1 // pred_check
      _
    $region3: #{tpu_custom_call.1} parent=1 // pred_check_branch
      %14 = sbr.rel (0) target = $region5
    $region4: #{tpu_custom_call.1} parent=1 // pred_region
      _
    $region5: #{tpu_custom_call.1} parent=1 // pred_fallthru
      _
    // Predicated region
    $region6: #{tpu_custom_call.1} parent=1 // pred_check
      _
    $region7: #{tpu_custom_call.1} parent=1 // pred_check_branch
      %16 = sbr.rel (0) target = $region9
    $region8: #{tpu_custom_call.1} parent=1 // pred_region
      _
    $region9: #{tpu_custom_call.1} parent=1 // pred_fallthru
      _
    // Predicated region
    $region10: #{tpu_custom_call.1} parent=1 // pred_check
      _
    $region11: #{tpu_custom_call.1} parent=1 // pred_check_branch
      %18 = sbr.rel (0) target = $region13
    $region12: #{tpu_custom_call.1} parent=1 // pred_region
      _
    $region13: #{tpu_custom_call.1} parent=1 // pred_fallthru
      _
    // Predicated region
    $region14: #{tpu_custom_call.1} parent=1 // pred_check
      _
    $region15: #{tpu_custom_call.1} parent=1 // pred_check_branch
      %20 = sbr.rel (0) target = $region17
    $region16: #{tpu_custom_call.1} parent=1 // pred_region
      _
    $region17: #{tpu_custom_call.1} parent=1 // pred_fallthru
      _
    // Predicated region
    $region18: #{tpu_custom_call.1} parent=1 // pred_check
      _
    $region19: #{tpu_custom_call.1} parent=1 // pred_check_branch
      %22 = sbr.rel (0) target = $region21
    $region20: #{tpu_custom_call.1} parent=1 // pred_region
      _
    $region21: #{tpu_custom_call.1} parent=1 // pred_fallthru
      _
    // Predicated region
    $region22: #{tpu_custom_call.1} parent=1 // pred_check
      _
    $region23: #{tpu_custom_call.1} parent=1 // pred_check_branch
      %24 = sbr.rel (0) target = $region25
    $region24: #{tpu_custom_call.1} parent=1 // pred_region
      _
    $region25: #{tpu_custom_call.1} parent=1 // pred_fallthru
      _
    // Predicated region
    $region26: #{tpu_custom_call.1} parent=1 // pred_check
      _
    $region27: #{tpu_custom_call.1} parent=1 // pred_check_branch
      %26 = sbr.rel (0) target = $region29
    $region28: #{tpu_custom_call.1} parent=1 // pred_region
      _
    $region29: #{tpu_custom_call.1} parent=1 // pred_fallthru
      _
    %v28 = vld [vmem:[%s0] sm:$0xf]
    %v29 = vld [vmem:[%s0 + $0x4] sm:$0xf]
    %v30 = vld [vmem:[%s3] sm:$0xf]
    %v31 = vld [vmem:[%s3 + $0x4] sm:$0xf]
    %v32 = vld [vmem:[%s3 + $0x8] sm:$0xf]
    %v33 = vld [vmem:[%s3 + $0xc] sm:$0xf]
    %v34 = vld [vmem:[%s4] sm:$0x1]
    %v36 = vlaneseq
    %v37 = vshrl.u32 %v36, 7
    %v38 = vsub.s32 0, %v37
    %v39 = vrot.slane %v34, %v38
    %v43 = vunpack.c.l.b16 %v28
    %v44 = vunpack.c.l.b16 %v29
    %v45 = vpack.c.b16 %v44, %v43
    %v50 = vunpack.c.l.b16 %v30
    %v51 = vunpack.c.l.b16 %v31
    %v52 = vunpack.c.l.b16 %v32
    %v53 = vunpack.c.l.b16 %v33
    %v54 = vpack.c.b16 %v51, %v50
    %v55 = vpack.c.b16 %v53, %v52
    %vm58 = vcmask 261120
    %v60 = vsel %vm58, %v45, 0
    %62 = vmatprep.subr.bf16.mxu0 0
    %63 = vmatpush1.bf16.msra.mxu0 %v54
    %64 = vmatprep.subr.bf16.mxu0 0
    %65 = vmatpush1.bf16.msra.mxu0 %v55
    %66 = vmatprep.subr.bf16.mxu0 0
    %67 = vmatpush1.bf16.msra.mxu0 0
    %68 = vmatprep.subr.bf16.mxu0 0
    %69 = vmatpush1.bf16.msra.mxu0 0
    %70 = vmatprep.subr.bf16.mxu0 0
    %71 = vmatpush1.bf16.msra.mxu0 0
    %72 = vmatprep.subr.bf16.mxu0 0
    %73 = vmatpush1.bf16.msra.mxu0 0
    %74 = vmatprep.subr.bf16.mxu0 0
    %75 = vmatpush1.bf16.msra.mxu0 0
    %76 = vmatprep.subr.bf16.mxu0 0
    %77 = vmatpush1.bf16.msra.mxu0 0
    %78 = vmatprep.subr.bf16.mxu0 0
    %79 = vmatpush1.bf16.msra.mxu0 0
    %80 = vmatprep.subr.bf16.mxu0 0
    %81 = vmatpush1.bf16.msra.mxu0 0
    %82 = vmatprep.subr.bf16.mxu0 0
    %83 = vmatpush1.bf16.msra.mxu0 0
    %84 = vmatprep.subr.bf16.mxu0 0
    %85 = vmatpush1.bf16.msra.mxu0 0
    %86 = vmatprep.subr.bf16.mxu0 0
    %87 = vmatpush1.bf16.msra.mxu0 0
    %88 = vmatprep.subr.bf16.mxu0 0
    %89 = vmatpush1.bf16.msra.mxu0 0
    %90 = vmatprep.subr.bf16.mxu0 0
    %91 = vmatpush1.bf16.msra.mxu0 0
    %92 = vmatprep.subr.bf16.mxu0 0
    %93 = vmatpush1.bf16.msra.mxu0 0
    %94 = vmatprep.mubr.bf16.mxu0 0
    %95 = vmatmul.mubr.bf16.gmra.mrb[0].mxu0 %v60
    %v96 = vpop.f32.mrb[0].mxu0
    %v97 = vadd.f32 %v39, %v96
    %v98 = vpop.f32.mrb[0].mxu0
    %v99 = vpop.f32.mrb[0].mxu0
    %v100 = vadd.f32 %v39, %v99
    %v101 = vpop.f32.mrb[0].mxu0
    %102 = vdwg.mxu0
    %v103 = vld [vmem:[%s5] sm:$0xf]
    %v104 = vld [vmem:[%s5 + $0x4] sm:$0xf]
    %v105 = vld [vmem:[%s5 + $0x8] sm:$0xf]
    %v106 = vld [vmem:[%s5 + $0xc] sm:$0xf]
    %v107 = vld [vmem:[%s5 + $0x10] sm:$0xf]
    %v108 = vld [vmem:[%s5 + $0x14] sm:$0xf]
    %v109 = vld [vmem:[%s5 + $0x18] sm:$0xf]
    %v110 = vld [vmem:[%s5 + $0x1c] sm:$0xf]
    %v111 = vld [vmem:[%s6] sm:$0x1]
    %vm112 = vcmp.ge.f32.partialorder %v97, 0.0
    %vm113 = vcmp.ge.f32.partialorder %v100, 0.0
    %v114 = vmul.f32 %v97, 0.1
    %v115 = vmul.f32 %v100, 0.1
    %v116 = vsel %vm112, %v97, %v114
    %v117 = vsel %vm113, %v100, %v115
    %v118 = vpack.c.bf16 %v117, %v116
    %v120 = vlaneseq
    %v121 = vshrl.u32 %v120, 7
    %v122 = vsub.s32 0, %v121
    %v123 = vrot.slane %v111, %v122
    %v133 = vunpack.c.l.b16 %v103
    %v134 = vunpack.c.l.b16 %v104
    %v135 = vunpack.c.l.b16 %v105
    %v136 = vunpack.c.l.b16 %v106
    %v137 = vunpack.c.l.b16 %v107
    %v138 = vunpack.c.l.b16 %v108
    %v139 = vunpack.c.l.b16 %v109
    %v140 = vunpack.c.l.b16 %v110
    %v141 = vpack.c.b16 %v134, %v133
    %v142 = vpack.c.b16 %v136, %v135
    %v143 = vpack.c.b16 %v138, %v137
    %v144 = vpack.c.b16 %v140, %v139
    %vm149 = vcmask 523264
    %v151 = vsel %vm149, %v118, 0
    %153 = vmatprep.subr.bf16.mxu0 0
    %154 = vmatpush1.bf16.msra.mxu0 %v141
    %155 = vmatprep.subr.bf16.mxu0 0
    %156 = vmatpush1.bf16.msra.mxu0 %v142
    %157 = vmatprep.subr.bf16.mxu0 0
    %158 = vmatpush1.bf16.msra.mxu0 %v143
    %159 = vmatprep.subr.bf16.mxu0 0
    %160 = vmatpush1.bf16.msra.mxu0 %v144
    %161 = vmatprep.subr.bf16.mxu0 0
    %162 = vmatpush1.bf16.msra.mxu0 0
    %163 = vmatprep.subr.bf16.mxu0 0
    %164 = vmatpush1.bf16.msra.mxu0 0
    %165 = vmatprep.subr.bf16.mxu0 0
    %166 = vmatpush1.bf16.msra.mxu0 0
    %167 = vmatprep.subr.bf16.mxu0 0
    %168 = vmatpush1.bf16.msra.mxu0 0
    %169 = vmatprep.subr.bf16.mxu0 0
    %170 = vmatpush1.bf16.msra.mxu0 0
    %171 = vmatprep.subr.bf16.mxu0 0
    %172 = vmatpush1.bf16.msra.mxu0 0
    %173 = vmatprep.subr.bf16.mxu0 0
    %174 = vmatpush1.bf16.msra.mxu0 0
    %175 = vmatprep.subr.bf16.mxu0 0
    %176 = vmatpush1.bf16.msra.mxu0 0
    %177 = vmatprep.subr.bf16.mxu0 0
    %178 = vmatpush1.bf16.msra.mxu0 0
    %179 = vmatprep.subr.bf16.mxu0 0
    %180 = vmatpush1.bf16.msra.mxu0 0
    %181 = vmatprep.subr.bf16.mxu0 0
    %182 = vmatpush1.bf16.msra.mxu0 0
    %183 = vmatprep.subr.bf16.mxu0 0
    %184 = vmatpush1.bf16.msra.mxu0 0
    %185 = vmatprep.mubr.bf16.mxu0 0
    %186 = vmatmul.mubr.bf16.gmra.mrb[0].mxu0 %v151
    %v187 = vpop.f32.mrb[0].mxu0
    %v188 = vadd.f32 %v123, %v187
    %v189 = vpop.f32.mrb[0].mxu0
    %v190 = vpop.f32.mrb[0].mxu0
    %v191 = vadd.f32 %v123, %v190
    %v192 = vpop.f32.mrb[0].mxu0
    %193 = vdwg.mxu0
    %vm194 = vcmp.ge.f32.partialorder %v188, 0.0
    %vm195 = vcmp.ge.f32.partialorder %v191, 0.0
    %v196 = vmul.f32 %v188, 0.1
    %v197 = vmul.f32 %v191, 0.1
    %v198 = vsel %vm194, %v188, %v196
    %v199 = vsel %vm195, %v191, %v197
    %v200 = vld [vmem:[%s1] sm:$0xf]
    %v201 = vld [vmem:[%s1 + $0x4] sm:$0xf]
    %v202 = vunpack.c.l.bf16 %v200
    %v203 = vunpack.c.l.bf16 %v201
    %v204 = vld [vmem:[%s2] sm:$0xff]
    %v205 = vld [vmem:[%s2 + $0x8] sm:$0xff]
    %v206 = vmul.f32 %v198, %v202
    %v207 = vmul.f32 %v199, %v203
    %v208 = vsel %vm58, %v206, 0.0
    %209 = vadd.xlane.f32.xlu0 %v208
    %v210 = vpop.xlane.xlu0 %209
    %v211 = vsel %vm58, %v207, 0.0
    %212 = vadd.xlane.f32.xlu0 %v211
    %v213 = vpop.xlane.xlu0 %212
    %v214 = vadd.f32 %v210, %v204
    %v215 = vadd.f32 %v213, %v205
    %v216 = vmul.f32 %v214, %v214
    %v217 = vmul.f32 %v215, %v215
    %vm218 = vcmask 7168
    %v219 = vsel %vm218, %v216, 0.0
    %v220 = vsel %vm218, %v217, 0.0
    %v221 = vadd.f32 %v219, %v220
    %222 = vadd.xlane.f32.xlu0 %v221
    %v223 = vpop.xlane.xlu0 %222
    %v224 = vrot.slane %v223, 4
    %v225 = vadd.f32 %v223, %v224
    %v226 = vrot.slane %v225, 2
    %v227 = vadd.f32 %v225, %v226
    %v228 = vrot.slane %v227, 1
    %v229 = vadd.f32 %v227, %v228
    %s230 = vtos %v229
    %v231 = vmul.f32 %v198, %v198
    %v232 = vmul.f32 %v199, %v199
    %v233 = vsel %vm58, %v231, 0.0
    %v234 = vsel %vm58, %v232, 0.0
    %v235 = vadd.f32 %v233, %v234
    %236 = vadd.xlane.f32.xlu0 %v235
    %v237 = vpop.xlane.xlu0 %236
    %v238 = vrot.slane %v237, 4
    %v239 = vadd.f32 %v237, %v238
    %v240 = vrot.slane %v239, 2
    %v241 = vadd.f32 %v239, %v240
    %v242 = vrot.slane %v241, 1
    %v243 = vadd.f32 %v241, %v242
    %s244 = vtos %v243
    %v245 = vmul.f32 %v202, %v202
    %v246 = vmul.f32 %v203, %v203
    %v247 = vsel %vm58, %v245, 0.0
    %v248 = vsel %vm58, %v246, 0.0
    %v249 = vadd.f32 %v247, %v248
    %250 = vadd.xlane.f32.xlu0 %v249
    %v251 = vpop.xlane.xlu0 %250
    %v252 = vrot.slane %v251, 4
    %v253 = vadd.f32 %v251, %v252
    %v254 = vrot.slane %v253, 2
    %v255 = vadd.f32 %v253, %v254
    %v256 = vrot.slane %v255, 1
    %v257 = vadd.f32 %v255, %v256
    %s258 = vtos %v257
    %v259 = vlaneseq
    %v260 = vand.u32 %v259, 127
    %vm261 = vcmp.eq.s32.totalorder %v260, 0
    %vm262 = vcmp.eq.s32.totalorder %v260, 1
    %vm263 = vcmp.eq.s32.totalorder %v260, 2
    %v264 = vstv %s258
    %v265 = vsel %vm263, %v264, 0.0
    %v266 = vstv %s244
    %v267 = vsel %vm262, %v266, %v265
    %v268 = vstv %s230
    %v269 = vsel %vm261, %v268, %v267
    %270 = vst [vmem:[#allocation2] sm:$0xff] %v269
    // Predicated region
    $region30: #{tpu_custom_call.1} parent=1 // pred_check
      _
    $region31: #{tpu_custom_call.1} parent=1 // pred_check_branch
      %272 = sbr.rel (0) target = $region33
    $region32: #{tpu_custom_call.1} parent=1 // pred_region
      %s274 = ssub.s32 128, 128
      %275 = vsyncadd [#allocation3], %s274
      %s277 = sshll.u32 [#allocation2], 4
      %s278 = int_to_ptr.vmem [resolvable:$true] %s277
      %280 = dma.vmem_to_hbm [thread:$0]  %s278, 128, %s7, [#allocation3]
    $region33: #{tpu_custom_call.1} parent=1 // pred_fallthru
      _
    // Predicated region
    $region34: #{tpu_custom_call.1} parent=1 // pred_check
      _
    $region35: #{tpu_custom_call.1} parent=1 // pred_check_branch
      %282 = sbr.rel (0) target = $region37
    $region36: #{tpu_custom_call.1} parent=1 // pred_region
      %283 = dma.done [#allocation3], 128
    $region37: #{tpu_custom_call.1} parent=1 // pred_fallthru
      _
    %284 = vsyncpa [#allocation3], 1

</llo_original>
